<compile_context>
chip_gen: v7x
topology: tpu7x:2x2x1
jax: 0.10.0
libtpu: 0.0.40
codegen_flags: <defaults>
</compile_context>

<pallas_src>
from functools import partial

import jax
import jax.numpy as jnp
from jax.experimental import pallas as pl
from jax.experimental.pallas import tpu as pltpu


def _contrastive_kernel(row_ref, col_ref, loss_ref, denom_acc, pos_acc,
                        *, inv_t, batch, block_m, block_n):
    ri = pl.program_id(0)
    ci = pl.program_id(1)

    @pl.when(ci == 0)
    def _init():
        denom_acc[...] = jnp.zeros_like(denom_acc)
        pos_acc[...] = jnp.zeros_like(pos_acc)

    # Scale the (block_m, D) row tile once instead of the (block_m, block_n)
    # sims tile; keep the input dtype so bf16 features feed the MXU directly.
    q = row_ref[...] * inv_t
    k = col_ref[...]

    # sims_ij = <feat_i, feat_j> / T ; contract the last axes of both operands
    # (no materialized transpose), accumulate in f32 on the MXU.
    sims = jax.lax.dot_general(
        q, k,
        dimension_numbers=(((1,), (1,)), ((), ())),
        preferred_element_type=jnp.float32)              # [block_m, block_n] f32

    row_ids = ri * block_m + jax.lax.broadcasted_iota(
        jnp.int32, (block_m, block_n), 0)
    col_ids = ci * block_n + jax.lax.broadcasted_iota(
        jnp.int32, (block_m, block_n), 1)

    # Denominator: every column except the self-similarity diagonal.
    e = jnp.where(col_ids == row_ids, 0.0, jnp.exp(sims))
    denom_acc[...] += jnp.sum(e, axis=-1, keepdims=True)

    # Positive logit: column (i + B) mod 2B of row i; it lands in exactly one
    # column tile, so a masked accumulate extracts it.
    pos_col = jnp.where(row_ids < batch, row_ids + batch, row_ids - batch)
    pos_acc[...] += jnp.sum(
        jnp.where(col_ids == pos_col, sims, 0.0), axis=-1, keepdims=True)

    @pl.when(ci == pl.num_programs(1) - 1)
    def _finalize():
        # -log(pos / (Ng + pos)) == log(Ng + pos) - log(pos)
        loss_ref[...] = jnp.log(denom_acc[...]) - pos_acc[...]


def _pick_block(n, target):
    """Largest multiple of 8 that divides n and is <= target (else n itself)."""
    if n <= target or n % 8 != 0:
        return n
    t = min(target, n)
    t -= t % 8
    while n % t != 0:
        t -= 8
    return t


def contrastive_loss(features_1, features_2, temperature=0.05,
                     *, block_m=256, block_n=512):
    """JAX/Pallas equivalent of ContrastiveLoss.forward -> {'loss': scalar}."""
    B, D = features_1.shape
    N = 2 * B
    features = jnp.concatenate([features_1, features_2], axis=0)   # [2B, D]

    bm = _pick_block(N, block_m)
    bn = _pick_block(N, block_n)

    kernel = partial(_contrastive_kernel,
                     inv_t=float(1.0 / temperature),
                     batch=B, block_m=bm, block_n=bn)

    per_row = pl.pallas_call(
        kernel,
        out_shape=jax.ShapeDtypeStruct((N, 1), jnp.float32),
        grid_spec=pltpu.PrefetchScalarGridSpec(
            num_scalar_prefetch=0,
            grid=(N // bm, N // bn),
            in_specs=[
                pl.BlockSpec((bm, D), lambda ri, ci: (ri, 0)),   # row feature tile
                pl.BlockSpec((bn, D), lambda ri, ci: (ci, 0)),   # col feature tile
            ],
            out_specs=pl.BlockSpec((bm, 1), lambda ri, ci: (ri, 0)),
            scratch_shapes=[pltpu.VMEM((bm, 1), jnp.float32),    # denom accumulator
                            pltpu.VMEM((bm, 1), jnp.float32)],   # pos-logit accumulator
        ),
        compiler_params=pltpu.CompilerParams(
            dimension_semantics=("parallel", "arbitrary"),
            vmem_limit_bytes=32 * 1024 * 1024,
        ),
    )(features, features)

    # Tiny [2B] mean left to plain XLA (negligible next to the B^2 kernel work).
    return {"loss": jnp.mean(per_row)}


def _reference(features_1, features_2, temperature=0.05):
    """Pure-JAX transcription of the PyTorch forward (for verification)."""
    B = features_1.shape[0]
    features = jnp.concatenate([features_1, features_2], axis=0)
    mask = ~jnp.tile(jnp.eye(B, dtype=bool), (2, 2))
    pos = jnp.exp(jnp.sum(features_1 * features_2, axis=-1) / temperature)
    pos = jnp.concatenate([pos, pos], axis=0)
    neg = jnp.exp(features @ features.T / temperature)
    Ng = jnp.sum(jnp.where(mask, neg, 0.0), axis=-1)
    return jnp.mean(-jnp.log(pos / (Ng + pos)))


if __name__ == "__main__":
    B, D = 8, 32
    temperature = 0.05

    key = jax.random.PRNGKey(0)
    k1, k2 = jax.random.split(key)
    f1 = jax.random.normal(k1, (B, D), dtype=jnp.float32)
    f2 = jax.random.normal(k2, (B, D), dtype=jnp.float32)
    # L2-normalize, as contrastive features are (keeps exp(sims/T) in f32 range).
    f1 = f1 / jnp.linalg.norm(f1, axis=-1, keepdims=True)
    f2 = f2 / jnp.linalg.norm(f2, axis=-1, keepdims=True)

    ref = _reference(f1, f2, temperature)

    # Small blocks so the tiled / accumulating 2x2 grid path is exercised.
    out = contrastive_loss(f1, f2, temperature, block_m=8, block_n=8)
    loss = jax.block_until_ready(out["loss"])
    assert jnp.allclose(loss, ref, rtol=2e-2, atol=2e-2), (loss, ref)

    # bf16 feature path (bf16 MXU inputs, f32 accumulation): looser tolerance.
    out_bf16 = contrastive_loss(f1.astype(jnp.bfloat16),
                                f2.astype(jnp.bfloat16),
                                temperature, block_m=8, block_n=8)
    loss_bf16 = jax.block_until_ready(out_bf16["loss"])
    assert jnp.allclose(loss_bf16, ref, rtol=1e-1, atol=1e-1), (loss_bf16, ref)

    print("KERNEL_OK")
</pallas_src>

<mosaic_0001>
module attributes {stable_mosaic.version = 11 : i64} {
  func.func @_contrastive_kernel(%arg0: i32, %arg1: i32, %arg2: memref<8x32xf32, #tpu.memory_space<vmem>>, %arg3: memref<8x32xf32, #tpu.memory_space<vmem>>, %arg4: memref<8x1xf32, #tpu.memory_space<vmem>>, %arg5: memref<8x1xf32, #tpu.memory_space<vmem>>, %arg6: memref<8x1xf32, #tpu.memory_space<vmem>>) attributes {dimension_semantics = [#tpu.dimension_semantics<parallel>, #tpu.dimension_semantics<arbitrary>], iteration_bounds = array<i64: 2, 2>, scalar_prefetch = 0 : i64, scratch_operands = 2 : i64, tpu.core_type = #tpu.core_type<tc>, window_params = [{transform_indices = @transform_0, window_bounds = array<i64: 8, 32>}, {transform_indices = @transform_1, window_bounds = array<i64: 8, 32>}, {transform_indices = @transform_2, window_bounds = array<i64: 8, 1>}]} {
    %c0_i32 = arith.constant 0 : i32
    %0 = arith.cmpi eq, %arg1, %c0_i32 : i32
    %1 = arith.extui %0 : i1 to i32
    %c0_i32_0 = arith.constant 0 : i32
    %2 = arith.cmpi ne, %1, %c0_i32_0 : i32
    scf.if %2 {
      %cst_22 = arith.constant 0.000000e+00 : f32
      %43 = vector.broadcast %cst_22 : f32 to vector<8x1xf32>
      %c0_23 = arith.constant 0 : index
      %c0_24 = arith.constant 0 : index
      %44 = vector.load %arg5[%c0_23, %c0_24] : memref<8x1xf32, #tpu.memory_space<vmem>>, vector<8x1xf32>
      tpu.vector_store %arg5[%c0_23, %c0_24], %43 {strides = array<i32>} : memref<8x1xf32, #tpu.memory_space<vmem>>, vector<8x1xf32>,
      %cst_25 = arith.constant 0.000000e+00 : f32
      %45 = vector.broadcast %cst_25 : f32 to vector<8x1xf32>
      %c0_26 = arith.constant 0 : index
      %c0_27 = arith.constant 0 : index
      %46 = vector.load %arg6[%c0_26, %c0_27] : memref<8x1xf32, #tpu.memory_space<vmem>>, vector<8x1xf32>
      tpu.vector_store %arg6[%c0_26, %c0_27], %45 {strides = array<i32>} : memref<8x1xf32, #tpu.memory_space<vmem>>, vector<8x1xf32>,
    } else {
    }
    %c0 = arith.constant 0 : index
    %c0_1 = arith.constant 0 : index
    %3 = vector.load %arg2[%c0, %c0_1] : memref<8x32xf32, #tpu.memory_space<vmem>>, vector<8x32xf32>
    %cst = arith.constant 2.000000e+01 : f32
    %4 = vector.broadcast %cst : f32 to vector<8x32xf32>
    %5 = arith.mulf %3, %4 : vector<8x32xf32>
    %c0_2 = arith.constant 0 : index
    %c0_3 = arith.constant 0 : index
    %6 = vector.load %arg3[%c0_2, %c0_3] : memref<8x32xf32, #tpu.memory_space<vmem>>, vector<8x32xf32>
    %cst_4 = arith.constant dense<0.000000e+00> : vector<8x8xf32>
    %7 = tpu.matmul %5, %6, %cst_4 {dimension_numbers = #tpu.dot_dimension_numbers<[1], [1], [0], [0], [0, 0, 1, 0], [], []>} : vector<8x32xf32>, vector<8x32xf32>, vector<8x8xf32> -> vector<8x8xf32>
    %c8_i32 = arith.constant 8 : i32
    %8 = arith.muli %arg0, %c8_i32 : i32
    %9 = tpu.iota {dimensions = array<i32: 0>} : vector<8x8xi32>
    %10 = vector.broadcast %8 : i32 to vector<8x8xi32>
    %11 = arith.addi %10, %9 : vector<8x8xi32>
    %c8_i32_5 = arith.constant 8 : i32
    %12 = arith.muli %arg1, %c8_i32_5 : i32
    %13 = tpu.iota {dimensions = array<i32: 1>} : vector<8x8xi32>
    %14 = vector.broadcast %12 : i32 to vector<8x8xi32>
    %15 = arith.addi %14, %13 : vector<8x8xi32>
    %16 = arith.cmpi eq, %15, %11 : vector<8x8xi32>
    %17 = math.exp %7 : vector<8x8xf32>
    %cst_6 = arith.constant 0.000000e+00 : f32
    %18 = vector.broadcast %cst_6 : f32 to vector<8x8xf32>
    %19 = arith.select %16, %18, %17 : vector<8x8xi1>, vector<8x8xf32>
    %c0_7 = arith.constant 0 : index
    %c0_8 = arith.constant 0 : index
    %20 = vector.load %arg5[%c0_7, %c0_8] : memref<8x1xf32, #tpu.memory_space<vmem>>, vector<8x1xf32>
    %cst_9 = arith.constant dense<0.000000e+00> : vector<8xf32>
    %21 = vector.multi_reduction <add>, %19, %cst_9 [1] : vector<8x8xf32> to vector<8xf32>
    %22 = vector.shape_cast %21 : vector<8xf32> to vector<8x1xf32>
    %23 = arith.addf %20, %22 : vector<8x1xf32>
    %c0_10 = arith.constant 0 : index
    %c0_11 = arith.constant 0 : index
    %24 = vector.load %arg5[%c0_10, %c0_11] : memref<8x1xf32, #tpu.memory_space<vmem>>, vector<8x1xf32>
    tpu.vector_store %arg5[%c0_10, %c0_11], %23 {strides = array<i32>} : memref<8x1xf32, #tpu.memory_space<vmem>>, vector<8x1xf32>,
    %c8_i32_12 = arith.constant 8 : i32
    %25 = vector.broadcast %c8_i32_12 : i32 to vector<8x8xi32>
    %26 = arith.cmpi slt, %11, %25 : vector<8x8xi32>
    %c8_i32_13 = arith.constant 8 : i32
    %27 = vector.broadcast %c8_i32_13 : i32 to vector<8x8xi32>
    %28 = arith.addi %11, %27 : vector<8x8xi32>
    %c8_i32_14 = arith.constant 8 : i32
    %29 = vector.broadcast %c8_i32_14 : i32 to vector<8x8xi32>
    %30 = arith.subi %11, %29 : vector<8x8xi32>
    %31 = arith.select %26, %28, %30 : vector<8x8xi1>, vector<8x8xi32>
    %c0_15 = arith.constant 0 : index
    %c0_16 = arith.constant 0 : index
    %32 = vector.load %arg6[%c0_15, %c0_16] : memref<8x1xf32, #tpu.memory_space<vmem>>, vector<8x1xf32>
    %33 = arith.cmpi eq, %15, %31 : vector<8x8xi32>
    %cst_17 = arith.constant 0.000000e+00 : f32
    %34 = vector.broadcast %cst_17 : f32 to vector<8x8xf32>
    %35 = arith.select %33, %7, %34 : vector<8x8xi1>, vector<8x8xf32>
    %cst_18 = arith.constant dense<0.000000e+00> : vector<8xf32>
    %36 = vector.multi_reduction <add>, %35, %cst_18 [1] : vector<8x8xf32> to vector<8xf32>
    %37 = vector.shape_cast %36 : vector<8xf32> to vector<8x1xf32>
    %38 = arith.addf %32, %37 : vector<8x1xf32>
    %c0_19 = arith.constant 0 : index
    %c0_20 = arith.constant 0 : index
    %39 = vector.load %arg6[%c0_19, %c0_20] : memref<8x1xf32, #tpu.memory_space<vmem>>, vector<8x1xf32>
    tpu.vector_store %arg6[%c0_19, %c0_20], %38 {strides = array<i32>} : memref<8x1xf32, #tpu.memory_space<vmem>>, vector<8x1xf32>,
    %c1_i32 = arith.constant 1 : i32
    %40 = arith.cmpi eq, %arg1, %c1_i32 : i32
    %41 = arith.extui %40 : i1 to i32
    %c0_i32_21 = arith.constant 0 : i32
    %42 = arith.cmpi ne, %41, %c0_i32_21 : i32
    scf.if %42 {
      %c0_22 = arith.constant 0 : index
      %c0_23 = arith.constant 0 : index
      %43 = vector.load %arg5[%c0_22, %c0_23] : memref<8x1xf32, #tpu.memory_space<vmem>>, vector<8x1xf32>
      %44 = math.log %43 : vector<8x1xf32>
      %c0_24 = arith.constant 0 : index
      %c0_25 = arith.constant 0 : index
      %45 = vector.load %arg6[%c0_24, %c0_25] : memref<8x1xf32, #tpu.memory_space<vmem>>, vector<8x1xf32>
      %46 = arith.subf %44, %45 : vector<8x1xf32>
      %c0_26 = arith.constant 0 : index
      %c0_27 = arith.constant 0 : index
      %47 = vector.load %arg4[%c0_26, %c0_27] : memref<8x1xf32, #tpu.memory_space<vmem>>, vector<8x1xf32>
      tpu.vector_store %arg4[%c0_26, %c0_27], %46 {strides = array<i32>} : memref<8x1xf32, #tpu.memory_space<vmem>>, vector<8x1xf32>,
    } else {
    }
    return
  }
  func.func @transform_0(%arg0: i32, %arg1: i32) -> (i32, i32) {
    %c0_i32 = arith.constant 0 : i32
    %c0_i32_0 = arith.constant 0 : i32
    return %arg0, %c0_i32 : i32, i32
  }
  func.func @transform_1(%arg0: i32, %arg1: i32) -> (i32, i32) {
    %c0_i32 = arith.constant 0 : i32
    %c0_i32_0 = arith.constant 0 : i32
    return %arg1, %c0_i32 : i32, i32
  }
  func.func @transform_2(%arg0: i32, %arg1: i32) -> (i32, i32) {
    %c0_i32 = arith.constant 0 : i32
    %c0_i32_0 = arith.constant 0 : i32
    return %arg0, %c0_i32 : i32, i32
  }
}

</mosaic_0001>

<llo_original>
// kernel: tpu_custom_call.1
$region0: #{tpu_custom_call.1}
  #allocation0 [shape = 'u32[]', space=smem, size = 0x4, offset = 0x4, fixed_abs, tag = 'smem constant byte address 0x4 - core index']
  #allocation1 [shape = 'u32[144,128]{1,0:T(1,128)}', space=vmem, size = 0x12000, scoped, tag = 'internal scratch']
  #allocation2 [shape = 'f32[8,1]{1,0:T(8,128)}', space=vmem, size = 0x1000, scoped, tag = 'scratch operand']
  #allocation3 [shape = 'f32[8,1]{1,0:T(8,128)}', space=vmem, size = 0x1000, scoped, tag = 'scratch operand']
  %s0 = inlined_call_operand.hbm [shape: f32[16,32], index: 0, kind: input, shape index: {}]
  %s1 = inlined_call_operand.hbm [shape: f32[16,32], index: 1, kind: input, shape index: {}]
  %s2 = inlined_call_operand.vmem [shape: f32[16,1], index: 2, kind: output, shape index: {}]
  %s3 = sld [smem:[#allocation0]]
  $region57: #{tpu_custom_call.1} parent=0
    _
  %s5 = ssub.s32 1, %s3
  %s6 = scalar_select 0, %s5, %s3
  $region1: #{tpu_custom_call.1} parent=0
    #allocation4 [shape = 'u8[8192]{0}', space=vmem, size = 0x2000, scoped, tag = 'input window, operand 0']
    #allocation5 [shape = 's32[2]{0}', space=sflag, size = 0x8, scoped, tag = 'scoped memory for tpu_custom_call.1']
    #allocation6 [shape = 'u8[8192]{0}', space=vmem, size = 0x2000, scoped, tag = 'input window, operand 1']
    #allocation7 [shape = 's32[2]{0}', space=sflag, size = 0x8, scoped, tag = 'scoped memory for tpu_custom_call.1']
    %7 = vsyncpa [#allocation5], 0
    %s8 = scalar_lea.sflag [#allocation5], 1
    %9 = vsyncpa %s8, 0
    %10 = vsyncpa [#allocation7], 0
    %s11 = scalar_lea.sflag [#allocation7], 1
    %12 = vsyncpa %s11, 0
    loop: start=0, step=1, limit=6
    $region2: #{tpu_custom_call.1} parent=1 // loop_pre_header
      _
    $region3: #{tpu_custom_call.1} parent=1 // loop_header
      %s14 = sphi 0, %s18
      %p15 = scmp.ge.s32.totalorder %s14, 6
      %s21 = sphi 0, %s33
      %s22 = sphi 0, %s29
      %s23 = sphi 0, %s21
      %s24 = sphi 0, %s22
      %s25 = sphi 0, %s23
      %s26 = sphi 0, %s24
      %s36 = sphi 0, %s38
      %s39 = sphi 0, %s36
      %s40 = sphi 0, %s39
      %s56 = sphi 0, %s40
      %s62 = sphi 0, %s64
      %s65 = sphi 0, %s62
      %s66 = sphi 0, %s65
      %s82 = sphi 0, %s66
      %s88 = sphi 0, %s90
      %s91 = sphi 0, %s88
      %s92 = sphi 0, %s91
      %s108 = sphi 0, %s92
    $region4: #{tpu_custom_call.1} parent=1 // loop_header_branch
      %17 = sbr.rel (%p15) target = $region8
    $region5: #{tpu_custom_call.1} parent=1 // loop_body
      %s19 = ssub.s32 %s14, 1
      %s20 = ssub.s32 %s14, 2
      %s27 = sadd.s32 1, %s22
      %p28 = scmp.ge.s32.totalorder %s27, 2
      %s29 = scalar_select %p28, 0, %s27
      %s30 = sadd.s32 1, %s21
      %s31 = scalar_select %p28, %s30, %s21
      %p32 = scmp.ge.s32.totalorder %s31, 2
      %s33 = scalar_select %p32, 0, %s31
      %s34 = ssub.s32 %s21, %s33
      %p35 = scmp.eq.s32.totalorder %s34, 0
      %s37 = sadd.s32 %s36, 1
      %s38 = scalar_select %p35, %s36, %s37
      %p41 = pneg %p35
      %p42 = scmp.eq.s32.totalorder %s14, 3
      %p43 = por %p41, %p42
      %p44 = scmp.ne.s32.totalorder %s36, %s39
      %p45 = scmp.eq.s32.totalorder %s14, 0
      %p46 = por %p44, %p45
      %p47 = scmp.ne.s32.totalorder %s36, %s39
      %p48 = scmp.eq.s32.totalorder %s19, 3
      %p49 = por %p47, %p48
      %p50 = scmp.ne.s32.totalorder %s39, %s40
      %p51 = scmp.eq.s32.totalorder %s19, 0
      %p52 = por %p50, %p51
      %p53 = scmp.ne.s32.totalorder %s39, %s40
      %p54 = scmp.eq.s32.totalorder %s20, 3
      %p55 = por %p53, %p54
      %p57 = scmp.ne.s32.totalorder %s40, %s56
      %p58 = scmp.eq.s32.totalorder %s20, 0
      %p59 = por %p57, %p58
      %s60 = ssub.s32 %s22, %s29
      %p61 = scmp.eq.s32.totalorder %s60, 0
      %s63 = sadd.s32 %s62, 1
      %s64 = scalar_select %p61, %s62, %s63
      %p67 = pneg %p61
      %p68 = scmp.eq.s32.totalorder %s14, 3
      %p69 = por %p67, %p68
      %p70 = scmp.ne.s32.totalorder %s62, %s65
      %p71 = scmp.eq.s32.totalorder %s14, 0
      %p72 = por %p70, %p71
      %p73 = scmp.ne.s32.totalorder %s62, %s65
      %p74 = scmp.eq.s32.totalorder %s19, 3
      %p75 = por %p73, %p74
      %p76 = scmp.ne.s32.totalorder %s65, %s66
      %p77 = scmp.eq.s32.totalorder %s19, 0
      %p78 = por %p76, %p77
      %p79 = scmp.ne.s32.totalorder %s65, %s66
      %p80 = scmp.eq.s32.totalorder %s20, 3
      %p81 = por %p79, %p80
      %p83 = scmp.ne.s32.totalorder %s66, %s82
      %p84 = scmp.eq.s32.totalorder %s20, 0
      %p85 = por %p83, %p84
      %s86 = ssub.s32 %s21, %s33
      %p87 = scmp.eq.s32.totalorder %s86, 0
      %s89 = sadd.s32 %s88, 1
      %s90 = scalar_select %p87, %s88, %s89
      %p93 = pneg %p87
      %p94 = scmp.eq.s32.totalorder %s14, 3
      %p95 = por %p93, %p94
      %p96 = scmp.ne.s32.totalorder %s88, %s91
      %p97 = scmp.eq.s32.totalorder %s14, 0
      %p98 = por %p96, %p97
      %p99 = scmp.ne.s32.totalorder %s88, %s91
      %p100 = scmp.eq.s32.totalorder %s19, 3
      %p101 = por %p99, %p100
      %p102 = scmp.ne.s32.totalorder %s91, %s92
      %p103 = scmp.eq.s32.totalorder %s19, 0
      %p104 = por %p102, %p103
      %p105 = scmp.ne.s32.totalorder %s91, %s92
      %p106 = scmp.eq.s32.totalorder %s20, 3
      %p107 = por %p105, %p106
      %p109 = scmp.ne.s32.totalorder %s92, %s108
      %p110 = scmp.eq.s32.totalorder %s20, 0
      %p111 = por %p109, %p110
      %p112 = scmp.le.s32.totalorder 1, %s14
      %p113 = scmp.lt.s32.totalorder %s14, 5
      %p114 = pnand %p112, %p113
      %p115 = pneg %p114
      // Predicated region
      $region9: #{tpu_custom_call.1} parent=5 // pred_check
        _
      $region10: #{tpu_custom_call.1} parent=5 // pred_check_branch
        %117 = sbr.rel (%p114) target = $region12
      $region11: #{tpu_custom_call.1} parent=5 // pred_region
        %s118 = ssub.s32 %s14, 1
      $region12: #{tpu_custom_call.1} parent=5 // pred_fallthru
        _
      %p119 = scmp.lt.s32.totalorder %s14, 4
      // Predicated region
      $region13: #{tpu_custom_call.1} parent=5 // pred_check
        %p120 = pneg %p119
      $region14: #{tpu_custom_call.1} parent=5 // pred_check_branch
        %122 = sbr.rel (%p120) target = $region16
      $region15: #{tpu_custom_call.1} parent=5 // pred_region
        // Predicated region
        $region17: #{tpu_custom_call.1} parent=15 // pred_check
          %p123 = pneg %p46
        $region18: #{tpu_custom_call.1} parent=15 // pred_check_branch
          %125 = sbr.rel (%p123) target = $region20
        $region19: #{tpu_custom_call.1} parent=15 // pred_region
          %s126 = sand.u32 %s36, 1
          %s127 = scalar_lea.sflag [#allocation5], %s126
          %s128 = sand.u32 %s36, 1
          %s129 = smul.addr %s128, 8
          %s130 = scalar_lea.vmem [#allocation4], %s129
          %s132 = ssub.s32 128, 128
          %133 = vsyncadd %s127, %s132
          %s134 = smul.addr %s21, 128
          %s135 = scalar_lea.hbm %s0, %s134
          %s137 = sshll.u32 %s130, 4
          %s138 = int_to_ptr.vmem [resolvable:$true] %s137
          %140 = dma.hbm_to_vmem [thread:$0]  %s135, 128, %s138, %s127
        $region20: #{tpu_custom_call.1} parent=15 // pred_fallthru
          _
        // Predicated region
        $region21: #{tpu_custom_call.1} parent=15 // pred_check
          %p141 = pneg %p72
        $region22: #{tpu_custom_call.1} parent=15 // pred_check_branch
          %143 = sbr.rel (%p141) target = $region24
        $region23: #{tpu_custom_call.1} parent=15 // pred_region
          %s144 = sand.u32 %s62, 1
          %s145 = scalar_lea.sflag [#allocation7], %s144
          %s146 = sand.u32 %s62, 1
          %s147 = smul.addr %s146, 8
          %s148 = scalar_lea.vmem [#allocation6], %s147
          %s150 = ssub.s32 128, 128
          %151 = vsyncadd %s145, %s150
          %s152 = smul.addr %s22, 128
          %s153 = scalar_lea.hbm %s1, %s152
          %s155 = sshll.u32 %s148, 4
          %s156 = int_to_ptr.vmem [resolvable:$true] %s155
          %158 = dma.hbm_to_vmem [thread:$0]  %s153, 128, %s156, %s145
        $region24: #{tpu_custom_call.1} parent=15 // pred_fallthru
          _
      $region16: #{tpu_custom_call.1} parent=5 // pred_fallthru
        _
      %p159 = scmp.le.s32.totalorder 1, %s14
      %p160 = scmp.lt.s32.totalorder %s14, 5
      %p161 = pnand %p159, %p160
      %p162 = pneg %p161
      // Predicated region
      $region25: #{tpu_custom_call.1} parent=5 // pred_check
        _
      $region26: #{tpu_custom_call.1} parent=5 // pred_check_branch
        %164 = sbr.rel (%p161) target = $region28
      $region27: #{tpu_custom_call.1} parent=5 // pred_region
        %s165 = ssub.s32 %s14, 1
        %s166 = sand.u32 %s39, 1
        %s167 = scalar_lea.sflag [#allocation5], %s166
        %s168 = sand.u32 %s39, 1
        %s169 = smul.addr %s168, 8
        %s170 = scalar_lea.vmem [#allocation4], %s169
        // Predicated region
        $region29: #{tpu_custom_call.1} parent=27 // pred_check
          %p171 = pneg %p52
        $region30: #{tpu_custom_call.1} parent=27 // pred_check_branch
          %173 = sbr.rel (%p171) target = $region32
        $region31: #{tpu_custom_call.1} parent=27 // pred_region
          %174 = dma.done %s167, 128
        $region32: #{tpu_custom_call.1} parent=27 // pred_fallthru
          _
        %s175 = sand.u32 %s65, 1
        %s176 = scalar_lea.sflag [#allocation7], %s175
        %s177 = sand.u32 %s65, 1
        %s178 = smul.addr %s177, 8
        %s179 = scalar_lea.vmem [#allocation6], %s178
        // Predicated region
        $region33: #{tpu_custom_call.1} parent=27 // pred_check
          %p180 = pneg %p78
        $region34: #{tpu_custom_call.1} parent=27 // pred_check_branch
          %182 = sbr.rel (%p180) target = $region36
        $region35: #{tpu_custom_call.1} parent=27 // pred_region
          %183 = dma.done %s176, 128
        $region36: #{tpu_custom_call.1} parent=27 // pred_fallthru
          _
        %s184 = sand.u32 %s39, 1
        %s185 = scalar_lea.sflag [#allocation5], %s184
        %s186 = sand.u32 %s39, 1
        %s187 = smul.addr %s186, 8
        %s188 = scalar_lea.vmem [#allocation4], %s187
        %p189 = pneg %p52
        %p190 = pneg %p49
        %s191 = sand.u32 %s65, 1
        %s192 = scalar_lea.sflag [#allocation7], %s191
        %s193 = sand.u32 %s65, 1
        %s194 = smul.addr %s193, 8
        %s195 = scalar_lea.vmem [#allocation6], %s194
        %p196 = pneg %p78
        %p197 = pneg %p75
        %p198 = pneg %p104
        %p199 = pneg %p101
        %p200 = scmp.lt.s32.totalorder %s23, 1
        %s201 = scalar_select %p200, %s23, 1
        %s202 = smul.addr %s201, 8
        %s203 = scalar_lea.vmem %s2, %s202
        %p204 = scmp.lt.s32.totalorder %s23, 1
        %s205 = scalar_select %p204, %s23, 1
        %s206 = smul.addr %s205, 8
        %s207 = scalar_lea.vmem %s2, %s206
        %p208 = scmp.eq.s32.totalorder %s24, 0
        // Predicated region
        $region37: #{tpu_custom_call.1} parent=27 // pred_check
          %p209 = pneg %p208
        $region38: #{tpu_custom_call.1} parent=27 // pred_check_branch
          %211 = sbr.rel (%p209) target = $region40
        $region39: #{tpu_custom_call.1} parent=27 // pred_region
          %vm212 = vcmask 7168
          %213 = vst.msk [vmem:[#allocation2] sm:$0xff] %vm212, 0.0
          %214 = vst.msk [vmem:[#allocation3] sm:$0xff] %vm212, 0.0
        $region40: #{tpu_custom_call.1} parent=27 // pred_fallthru
          _
        %v215 = vld [vmem:[%s170] sm:$0xff]
        %v216 = vmul.f32 %v215, 20.0
        %v217 = vld [vmem:[%s179] sm:$0xff]
        %vm218 = vcmask 261120
        %v220 = vsel %vm218, %v216, 0
        %v223 = vsel %vm218, %v217, 0
        %225 = vmatprep.subr.mxu0 0.0
        %226 = vmatpush1.xpose.msra.mxu0 %v223
        %227 = vmatprep.subr.mxu0 0.0
        %228 = vmatpush1.xpose.msra.mxu0 0.0
        %229 = vmatprep.subr.mxu0 0.0
        %230 = vmatpush1.xpose.msra.mxu0 0.0
        %231 = vmatprep.subr.mxu0 0.0
        %232 = vmatpush1.xpose.msra.mxu0 0.0
        %233 = vmatprep.subr.mxu0 0.0
        %234 = vmatpush1.xpose.msra.mxu0 0.0
        %235 = vmatprep.subr.mxu0 0.0
        %236 = vmatpush1.xpose.msra.mxu0 0.0
        %237 = vmatprep.subr.mxu0 0.0
        %238 = vmatpush1.xpose.msra.mxu0 0.0
        %239 = vmatprep.subr.mxu0 0.0
        %240 = vmatpush1.xpose.msra.mxu0 0.0
        %241 = vmatprep.subr.mxu0 0.0
        %242 = vmatpush1.xpose.msra.mxu0 0.0
        %243 = vmatprep.subr.mxu0 0.0
        %244 = vmatpush1.xpose.msra.mxu0 0.0
        %245 = vmatprep.subr.mxu0 0.0
        %246 = vmatpush1.xpose.msra.mxu0 0.0
        %247 = vmatprep.subr.mxu0 0.0
        %248 = vmatpush1.xpose.msra.mxu0 0.0
        %249 = vmatprep.subr.mxu0 0.0
        %250 = vmatpush1.xpose.msra.mxu0 0.0
        %251 = vmatprep.subr.mxu0 0.0
        %252 = vmatpush1.xpose.msra.mxu0 0.0
        %253 = vmatprep.subr.mxu0 0.0
        %254 = vmatpush1.xpose.msra.mxu0 0.0
        %255 = vmatprep.subr.mxu0 0.0
        %256 = vmatpush1.xpose.msra.mxu0 0.0
        %257 = vmatprep.subr.mxu0 0.0
        %258 = vmatpush1.xpose.msra.mxu0 0.0
        %259 = vmatprep.subr.mxu0 0.0
        %260 = vmatpush1.xpose.msra.mxu0 0.0
        %261 = vmatprep.subr.mxu0 0.0
        %262 = vmatpush1.xpose.msra.mxu0 0.0
        %263 = vmatprep.subr.mxu0 0.0
        %264 = vmatpush1.xpose.msra.mxu0 0.0
        %265 = vmatprep.subr.mxu0 0.0
        %266 = vmatpush1.xpose.msra.mxu0 0.0
        %267 = vmatprep.subr.mxu0 0.0
        %268 = vmatpush1.xpose.msra.mxu0 0.0
        %269 = vmatprep.subr.mxu0 0.0
        %270 = vmatpush1.xpose.msra.mxu0 0.0
        %271 = vmatprep.subr.mxu0 0.0
        %272 = vmatpush1.xpose.msra.mxu0 0.0
        %273 = vmatprep.subr.mxu0 0.0
        %274 = vmatpush1.xpose.msra.mxu0 0.0
        %275 = vmatprep.subr.mxu0 0.0
        %276 = vmatpush1.xpose.msra.mxu0 0.0
        %277 = vmatprep.subr.mxu0 0.0
        %278 = vmatpush1.xpose.msra.mxu0 0.0
        %279 = vmatprep.subr.mxu0 0.0
        %280 = vmatpush1.xpose.msra.mxu0 0.0
        %281 = vmatprep.subr.mxu0 0.0
        %282 = vmatpush1.xpose.msra.mxu0 0.0
        %283 = vmatprep.subr.mxu0 0.0
        %284 = vmatpush1.xpose.msra.mxu0 0.0
        %285 = vmatprep.subr.mxu0 0.0
        %286 = vmatpush1.xpose.msra.mxu0 0.0
        %287 = vmatprep.subr.mxu0 0.0
        %288 = vmatpush1.xpose.msra.mxu0 0.0
        %289 = vmatprep.mubr.f32.mxu0 0.0
        %290 = vmatmul.mubr.f32.gmra.mrb[0].mxu0 %v220
        %v291 = vpop.f32.mrb[0].mxu0
        %v292 = vadd.f32 0.0, %v291
        %v293 = vpop.f32.mrb[0].mxu0
        %294 = vdwg.mxu0
        %s295 = smul.u32 %s23, 8
        %v296 = vlaneseq
        %v297 = vshrl.u32 %v296, 7
        %v298 = vstv %s295
        %v299 = vadd.s32 %v298, %v297
        %s300 = smul.u32 %s24, 8
        %v301 = vlaneseq
        %v302 = vand.u32 %v301, 127
        %v303 = vstv %s300
        %v304 = vadd.s32 %v303, %v302
        %vm305 = vcmp.eq.s32.totalorder %v304, %v299
        %v306 = vmul.f32 %v292, 1.442695
        %v307 = vpow.pop %v306
        %v308 = vsel %vm305, 0.0, %v307
        %v309 = vld [vmem:[#allocation2] sm:$0xff]
        %vm310 = vcmask 64512
        %v311 = vsel %vm310, %v308, 0.0
        %312 = vadd.xlane.f32.xlu0 %v311
        %v313 = vpop.xlane.xlu0 %312
        %v314 = vadd.f32 %v309, %v313
        %vm315 = vcmask 7168
        %316 = vst.msk [vmem:[#allocation2] sm:$0xff] %vm315, %v314
        %vm317 = vcmp.lt.s32.totalorder %v299, 8
        %v318 = vadd.s32 %v299, 8
        %v319 = vsub.s32 %v299, 8
        %v320 = vsel %vm317, %v318, %v319
        %v321 = vld [vmem:[#allocation3] sm:$0xff]
        %vm322 = vcmp.eq.s32.totalorder %v304, %v320
        %v323 = vsel %vm322, %v292, 0.0
        %v324 = vsel %vm310, %v323, 0.0
        %325 = vadd.xlane.f32.xlu0 %v324
        %v326 = vpop.xlane.xlu0 %325
        %v327 = vadd.f32 %v321, %v326
        %328 = vst.msk [vmem:[#allocation3] sm:$0xff] %vm315, %v327
        %p329 = scmp.eq.s32.totalorder %s24, 1
        // Predicated region
        $region41: #{tpu_custom_call.1} parent=27 // pred_check
          %p330 = pneg %p329
        $region42: #{tpu_custom_call.1} parent=27 // pred_check_branch
          %332 = sbr.rel (%p330) target = $region44
        $region43: #{tpu_custom_call.1} parent=27 // pred_region
          %v333 = vld [vmem:[#allocation2] sm:$0xff]
          %v334 = vlog2.pop %v333
          %v335 = vmul.f32 %v334, 0.6931472
          %v336 = vld [vmem:[#allocation3] sm:$0xff]
          %v337 = vsub.f32 %v335, %v336
          %338 = vst.msk [vmem:[%s207] sm:$0xff] %vm315, %v337
        $region44: #{tpu_custom_call.1} parent=27 // pred_fallthru
          _
        %p339 = scmp.lt.s32.totalorder %s23, 1
        %s340 = scalar_select %p339, %s23, 1
        %s341 = smul.addr %s340, 8
        %s342 = scalar_lea.vmem %s2, %s341
        // Predicated region
        $region45: #{tpu_custom_call.1} parent=27 // pred_check
          %p343 = pneg %p101
        $region46: #{tpu_custom_call.1} parent=27 // pred_check_branch
          %345 = sbr.rel (%p343) target = $region48
        $region47: #{tpu_custom_call.1} parent=27 // pred_region
          _
        $region48: #{tpu_custom_call.1} parent=27 // pred_fallthru
          _
      $region28: #{tpu_custom_call.1} parent=5 // pred_fallthru
        _
      %p346 = scmp.le.s32.totalorder 2, %s14
      // Predicated region
      $region49: #{tpu_custom_call.1} parent=5 // pred_check
        %p347 = pneg %p346
      $region50: #{tpu_custom_call.1} parent=5 // pred_check_branch
        %349 = sbr.rel (%p347) target = $region52
      $region51: #{tpu_custom_call.1} parent=5 // pred_region
        %s350 = ssub.s32 %s14, 2
        // Predicated region
        $region53: #{tpu_custom_call.1} parent=51 // pred_check
          %p351 = pneg %p107
        $region54: #{tpu_custom_call.1} parent=51 // pred_check_branch
          %353 = sbr.rel (%p351) target = $region56
        $region55: #{tpu_custom_call.1} parent=51 // pred_region
          %p354 = scmp.lt.s32.totalorder %s25, 1
          %s355 = scalar_select %p354, %s25, 1
          %s356 = smul.addr %s355, 8
          %s357 = scalar_lea.vmem %s2, %s356
        $region56: #{tpu_custom_call.1} parent=51 // pred_fallthru
          _
      $region52: #{tpu_custom_call.1} parent=5 // pred_fallthru
        _
    $region6: #{tpu_custom_call.1} parent=1 // loop_footer
      %s18 = sadd.s32 1, %s14
    $region7: #{tpu_custom_call.1} parent=1 // loop_footer_branch
      %13 = sbr.rel target = $region3
    $region8: #{tpu_custom_call.1} parent=1 // loop_exit
      _
    %358 = vsyncpa [#allocation5], 1
    %s359 = scalar_lea.sflag [#allocation5], 1
    %360 = vsyncpa %s359, 1
    %361 = vsyncpa [#allocation7], 1
    %s362 = scalar_lea.sflag [#allocation7], 1
    %363 = vsyncpa %s362, 1

</llo_original>
